<compile_context>
chip_gen: v5e
topology: v5e:2x2
jax: 0.10.0
libtpu: 0.0.40
codegen_flags: <defaults>
</compile_context>

<pallas_src>
import functools

import jax
import jax.numpy as jnp
from jax.experimental import pallas as pl
from jax.experimental.pallas import tpu as pltpu


_VMEM_LIMIT = 50 * 1024 * 1024          # <= v7x physical 64 MiB per TensorCore


# ----------------------------------------------------------------------------
# Kernel 1: ConvTranspose2d(k=4, s=2, p=1), all 4 sub-pixel phases per step.
#
# out[n, 2*oy+a, 2*ox+b, co] =
#   bias[co] + sum_{dy,dx in {0,1}} sum_ci xpad[n, oy+a+dy, ox+b+dx, ci]
#                                          * W[ci, co, 3-a-2dy, 3-b-2dx]
#
# Per grid step (n, row-tile i, co-tile): the kernel receives a th-row slab of
# the padded input plus its 2-row halo, slices all 16 shifted windows from
# VMEM, and writes the 4 phase planes of the output tile.
# ----------------------------------------------------------------------------
def _convt_kernel(x_ref, h_ref, w_ref, b_ref, o_ref, *, th, W, flat):
    # x_ref: (1, th, W+2, Cin)      h_ref: (1, 1, 2, W+2, Cin)
    # w_ref: (16, Cin, tco)         b_ref: (1, tco)
    # o_ref: (4, 1, th, W, tco)
    xin = jnp.concatenate([x_ref[0], h_ref[0, 0]], axis=0)      # (th+2, W+2, Cin)
    bias = b_ref[...]                                           # (1, tco)
    for a in (0, 1):
        for b in (0, 1):
            if flat:
                acc = None
                for dy in (0, 1):
                    for dx in (0, 1):
                        win = xin[a + dy:a + dy + th, b + dx:b + dx + W, :]
                        win2 = win.reshape(th * W, -1)           # (th*W, Cin)
                        k = ((a * 2 + b) * 2 + dy) * 2 + dx
                        part = jnp.dot(win2, w_ref[k],
                                       preferred_element_type=jnp.float32)
                        acc = part if acc is None else acc + part
                y = (acc + bias).reshape(th, W, -1)              # (th, W, tco)
            else:
                # W not a multiple of 8 (only the 4x4 first layer): row loop,
                # avoids reshapes across the tiled dims.
                rows = []
                for t in range(th):
                    racc = None
                    for dy in (0, 1):
                        for dx in (0, 1):
                            win = xin[t + a + dy, b + dx:b + dx + W, :]  # (W, Cin)
                            k = ((a * 2 + b) * 2 + dy) * 2 + dx
                            part = jnp.dot(win, w_ref[k],
                                           preferred_element_type=jnp.float32)
                            racc = part if racc is None else racc + part
                    rows.append(racc + bias)                     # (W, tco)
                y = jnp.stack(rows, axis=0)                      # (th, W, tco)
            o_ref[a * 2 + b, 0] = y


def conv_transpose2d_phases(x, w_pt, bias):
    """x: (N, H, W, Cin) f32 NHWC; w_pt: PyTorch layout (Cin, Cout, 4, 4).

    Returns phase-separated output (4, N, H, W, Cout) where plane a*2+b holds
    out[:, 2*oy+a, 2*ox+b, :]."""
    N, H, W, Cin = x.shape
    Cout = w_pt.shape[1]

    th = min(H, 8)
    while H % th:
        th -= 1
    T = H // th
    tco = min(Cout, 128)
    while Cout % tco:
        tco -= 1
    nco = Cout // tco

    xpad = jnp.pad(x, ((0, 0), (1, 1), (1, 1), (0, 0)))          # (N, H+2, W+2, Cin)
    # 2-row halo band for each row tile: rows (i+1)*th and (i+1)*th + 1 of xpad.
    r0 = xpad[:, th:H + 1:th]                                    # (N, T, W+2, Cin)
    r1 = xpad[:, th + 1:H + 2:th]                                # (N, T, W+2, Cin)
    halo = jnp.stack([r0, r1], axis=2)                           # (N, T, 2, W+2, Cin)

    # Merged (phase, tap) weight taps: k = ((a*2+b)*2+dy)*2+dx.
    taps = []
    for a in (0, 1):
        for b in (0, 1):
            for dy in (0, 1):
                for dx in (0, 1):
                    taps.append(w_pt[:, :, 3 - a - 2 * dy, 3 - b - 2 * dx])
    wm = jnp.stack(taps, axis=0)                                 # (16, Cin, Cout)
    bias2 = bias.reshape(1, Cout)

    flat = (W % 8 == 0)
    kern = functools.partial(_convt_kernel, th=th, W=W, flat=flat)

    return pl.pallas_call(
        kern,
        out_shape=jax.ShapeDtypeStruct((4, N, H, W, Cout), jnp.float32),
        grid_spec=pltpu.PrefetchScalarGridSpec(
            num_scalar_prefetch=0,
            grid=(N, T, nco),
            in_specs=[
                pl.BlockSpec((1, th, W + 2, Cin), lambda n, i, co: (n, i, 0, 0)),
                pl.BlockSpec((1, 1, 2, W + 2, Cin),
                             lambda n, i, co: (n, i, 0, 0, 0)),
                pl.BlockSpec((16, Cin, tco), lambda n, i, co: (0, 0, co)),
                pl.BlockSpec((1, tco), lambda n, i, co: (0, co)),
            ],
            out_specs=pl.BlockSpec((4, 1, th, W, tco),
                                   lambda n, i, co: (0, n, i, 0, co)),
        ),
        compiler_params=pltpu.CompilerParams(
            dimension_semantics=("parallel", "parallel", "parallel"),
            vmem_limit_bytes=_VMEM_LIMIT,
        ),
    )(xpad, halo, wm, bias2)


# ----------------------------------------------------------------------------
# Kernel 2: Linear (single block matmul).
# ----------------------------------------------------------------------------
def _linear_kernel(z_ref, w_ref, b_ref, o_ref):
    o_ref[...] = jnp.dot(z_ref[...], w_ref[...],
                         preferred_element_type=jnp.float32) + b_ref[...]


def linear(z, w, b):
    N, K = z.shape
    D = w.shape[1]
    return pl.pallas_call(
        _linear_kernel,
        out_shape=jax.ShapeDtypeStruct((N, D), jnp.float32),
        grid_spec=pltpu.PrefetchScalarGridSpec(
            num_scalar_prefetch=0,
            grid=(1,),
            in_specs=[pl.BlockSpec((N, K), lambda i: (0, 0)),
                      pl.BlockSpec((K, D), lambda i: (0, 0)),
                      pl.BlockSpec((1, D), lambda i: (0, 0))],
            out_specs=pl.BlockSpec((N, D), lambda i: (0, 0)),
        ),
        compiler_params=pltpu.CompilerParams(
            dimension_semantics=("arbitrary",),
            vmem_limit_bytes=_VMEM_LIMIT,
        ),
    )(z, w, b.reshape(1, D))


# ----------------------------------------------------------------------------
# Lane-dense view helpers for the elementwise / reduction kernels.
# ----------------------------------------------------------------------------
def _dense_shape(P, C):
    R = 128
    while R > 1 and P % R:
        R //= 2
    rows, cols = P // R, R * C
    tr = rows
    while tr % 2 == 0 and tr * cols * 4 > (4 << 20):
        tr //= 2
    if tr != rows and tr % 8:
        tr = rows
    return R, rows, cols, tr


# ----------------------------------------------------------------------------
# Kernel 3: per-channel sum / sum-of-squares (BatchNorm training-mode stats).
# ----------------------------------------------------------------------------
def _stats_kernel(x_ref, s_ref, ss_ref):
    @pl.when(pl.program_id(0) == 0)
    def _():
        s_ref[...] = jnp.zeros_like(s_ref)
        ss_ref[...] = jnp.zeros_like(ss_ref)

    x = x_ref[...]
    s_ref[...] += jnp.sum(x, axis=0, keepdims=True)
    ss_ref[...] += jnp.sum(x * x, axis=0, keepdims=True)


def channel_stats(xf):
    # xf: (P, C) -> per-channel mean, biased variance (training-mode BN).
    P, C = xf.shape
    R, rows, cols, tr = _dense_shape(P, C)
    xs = xf.reshape(rows, cols)
    s, ss = pl.pallas_call(
        _stats_kernel,
        out_shape=(jax.ShapeDtypeStruct((1, cols), jnp.float32),
                   jax.ShapeDtypeStruct((1, cols), jnp.float32)),
        grid_spec=pltpu.PrefetchScalarGridSpec(
            num_scalar_prefetch=0,
            grid=(rows // tr,),
            in_specs=[pl.BlockSpec((tr, cols), lambda i: (i, 0))],
            out_specs=(pl.BlockSpec((1, cols), lambda i: (0, 0)),
                       pl.BlockSpec((1, cols), lambda i: (0, 0))),
        ),
        compiler_params=pltpu.CompilerParams(
            dimension_semantics=("arbitrary",),
            vmem_limit_bytes=_VMEM_LIMIT,
        ),
    )(xs)
    s = s.reshape(R, C).sum(axis=0)
    ss = ss.reshape(R, C).sum(axis=0)
    mean = s / P
    var = ss / P - mean * mean
    return mean, var


# ----------------------------------------------------------------------------
# Kernel 4: fused BatchNorm affine + activation (lane-dense, elementwise).
# ----------------------------------------------------------------------------
def _bn_act_kernel(x_ref, sc_ref, sh_ref, o_ref, *, act):
    y = x_ref[...] * sc_ref[...] + sh_ref[...]
    if act == "leaky_relu":
        y = jnp.where(y >= 0, y, 0.01 * y)      # PyTorch default slope 0.01
    else:                                       # sigmoid
        y = 1.0 / (1.0 + jnp.exp(-y))
    o_ref[...] = y


def bn_act(xf, scale, shift, act):
    P, C = xf.shape
    R, rows, cols, tr = _dense_shape(P, C)
    xs = xf.reshape(rows, cols)
    sc = jnp.tile(scale, R).reshape(1, cols)
    sh = jnp.tile(shift, R).reshape(1, cols)
    out = pl.pallas_call(
        functools.partial(_bn_act_kernel, act=act),
        out_shape=jax.ShapeDtypeStruct((rows, cols), jnp.float32),
        grid_spec=pltpu.PrefetchScalarGridSpec(
            num_scalar_prefetch=0,
            grid=(rows // tr,),
            in_specs=[pl.BlockSpec((tr, cols), lambda i: (i, 0)),
                      pl.BlockSpec((1, cols), lambda i: (0, 0)),
                      pl.BlockSpec((1, cols), lambda i: (0, 0))],
            out_specs=pl.BlockSpec((tr, cols), lambda i: (i, 0)),
        ),
        compiler_params=pltpu.CompilerParams(
            dimension_semantics=("parallel",),
            vmem_limit_bytes=_VMEM_LIMIT,
        ),
    )(xs, sc, sh)
    return out.reshape(P, C)


# ----------------------------------------------------------------------------
# Parameters (deterministic synthetic init, PyTorch shapes)
# ----------------------------------------------------------------------------
CHANNELS_FULL = [1024, 512, 256, 128, 64, 32, 16, 8, 3]     # original module


def init_params(key, channels=CHANNELS_FULL, latent=100):
    c0 = channels[0]
    n_conv = len(channels) - 1
    keys = jax.random.split(key, 2 + 2 * n_conv)
    w_lin = jax.random.normal(keys[0], (c0 * 16, latent), jnp.float32) * 0.02
    b_lin = jax.random.normal(keys[1], (c0 * 16,), jnp.float32) * 0.02
    convs = []
    for i in range(n_conv):
        cin, cout = channels[i], channels[i + 1]
        w = jax.random.normal(keys[2 + 2 * i], (cin, cout, 4, 4), jnp.float32) * 0.02
        b = jax.random.normal(keys[3 + 2 * i], (cout,), jnp.float32) * 0.02
        gamma = jnp.ones((cout,), jnp.float32)   # BatchNorm2d default init
        beta = jnp.zeros((cout,), jnp.float32)
        convs.append((w, b, gamma, beta))
    return {"form": (w_lin, b_lin), "convs": convs}


# ----------------------------------------------------------------------------
# Forward pass
# ----------------------------------------------------------------------------
def generator_forward(params, z):
    w_lin, b_lin = params["form"]
    N = z.shape[0]
    D = w_lin.shape[0]
    c0 = D // 16

    # Permute Linear output columns so h lands directly in NHWC (N, 4, 4, c0):
    # NHWC position (y, x, c) must read PyTorch column c*16 + y*4 + x.
    cc = jnp.arange(c0)
    yy = jnp.arange(4)
    xx = jnp.arange(4)
    perm = (cc[None, None, :] * 16 + yy[:, None, None] * 4
            + xx[None, :, None]).reshape(-1)
    wp = w_lin[perm, :].T          # (latent, D)
    bp = b_lin[perm]

    h = linear(z, wp, bp)          # (N, D)
    xnhwc = h.reshape(N, 4, 4, c0)

    n_layers = len(params["convs"])
    for li, (w, b, gamma, beta) in enumerate(params["convs"]):
        yph = conv_transpose2d_phases(xnhwc, w, b)     # (4, N, H, W, Cout)
        _, n_, h_, w_, c_ = yph.shape

        xf = yph.reshape(-1, c_)                        # (4*N*H*W, C)
        mean, var = channel_stats(xf)                   # training-mode stats
        inv = gamma / jnp.sqrt(var + 1e-5)
        scale, shift = inv, beta - mean * inv
        act = "sigmoid" if li == n_layers - 1 else "leaky_relu"
        xf = bn_act(xf, scale, shift, act)
        yph = xf.reshape(2, 2, n_, h_, w_, c_)          # (a, b, N, H, W, C)

        if li == n_layers - 1:
            # (a,b,n,oy,ox,c) -> (n,c,oy,a,ox,b) -> NCHW (N, C, 2H, 2W)
            return yph.transpose(2, 5, 3, 0, 4, 1).reshape(n_, c_, 2 * h_, 2 * w_)
        # interleave phases into NHWC for the next layer
        # TODO(synk): could be fused into the bn_act output write (strided store).
        xnhwc = yph.transpose(2, 3, 0, 4, 1, 5).reshape(n_, 2 * h_, 2 * w_, c_)


if __name__ == "__main__":
    key = jax.random.PRNGKey(0)
    pkey, zkey = jax.random.split(key)
    # Small configuration (same architecture / ops as the PyTorch module, with
    # scaled-down widths and depth) so the script also finishes quickly under
    # the Pallas TPU interpreter.  The original module is CHANNELS_FULL
    # (8 conv layers, output (N, 3, 1024, 1024)).
    channels = [64, 256, 32, 3]
    params = init_params(pkey, channels=channels, latent=100)
    z = jax.random.normal(zkey, (2, 100), jnp.float32)     # batch=2, latent=100

    out = generator_forward(params, z)
    out = jax.block_until_ready(out)

    n_conv = len(channels) - 1
    side = 4 * (2 ** n_conv)
    assert out.shape == (2, 3, side, side), out.shape
    assert bool(jnp.all(jnp.isfinite(out)))
    assert bool(jnp.all((out >= 0.0) & (out <= 1.0)))       # sigmoid output range
    print("KERNEL_OK")
</pallas_src>

<mosaic_0001>
module attributes {stable_mosaic.version = 11 : i64} {
  func.func @_linear_kernel(%arg0: i32, %arg1: memref<2x100xf32, #tpu.memory_space<vmem>>, %arg2: memref<100x1024xf32, #tpu.memory_space<vmem>>, %arg3: memref<1x1024xf32, #tpu.memory_space<vmem>>, %arg4: memref<2x1024xf32, #tpu.memory_space<vmem>>) attributes {dimension_semantics = [#tpu.dimension_semantics<arbitrary>], iteration_bounds = array<i64: 1>, scalar_prefetch = 0 : i64, scratch_operands = 0 : i64, tpu.core_type = #tpu.core_type<tc>, window_params = [{pipeline_mode = #tpu.pipeline_mode<synchronous>, transform_indices = @transform_0, window_bounds = array<i64: 2, 100>}, {pipeline_mode = #tpu.pipeline_mode<synchronous>, transform_indices = @transform_1, window_bounds = array<i64: 100, 1024>}, {pipeline_mode = #tpu.pipeline_mode<synchronous>, transform_indices = @transform_2, window_bounds = array<i64: 1, 1024>}, {pipeline_mode = #tpu.pipeline_mode<synchronous>, transform_indices = @transform_3, window_bounds = array<i64: 2, 1024>}]} {
    %c0 = arith.constant 0 : index
    %c0_0 = arith.constant 0 : index
    %0 = vector.load %arg1[%c0, %c0_0] : memref<2x100xf32, #tpu.memory_space<vmem>>, vector<2x100xf32>
    %c0_1 = arith.constant 0 : index
    %c0_2 = arith.constant 0 : index
    %1 = vector.load %arg2[%c0_1, %c0_2] : memref<100x1024xf32, #tpu.memory_space<vmem>>, vector<100x1024xf32>
    %cst = arith.constant dense<0.000000e+00> : vector<2x1024xf32>
    %2 = tpu.matmul %0, %1, %cst {dimension_numbers = #tpu.dot_dimension_numbers<[1], [0], [0], [1], [0, 0, 1, 1], [], []>} : vector<2x100xf32>, vector<100x1024xf32>, vector<2x1024xf32> -> vector<2x1024xf32>
    %c0_3 = arith.constant 0 : index
    %c0_4 = arith.constant 0 : index
    %3 = vector.load %arg3[%c0_3, %c0_4] : memref<1x1024xf32, #tpu.memory_space<vmem>>, vector<1x1024xf32>
    %4 = vector.broadcast %3 : vector<1x1024xf32> to vector<2x1024xf32>
    %5 = arith.addf %2, %4 : vector<2x1024xf32>
    %c0_5 = arith.constant 0 : index
    %c0_6 = arith.constant 0 : index
    %6 = vector.load %arg4[%c0_5, %c0_6] : memref<2x1024xf32, #tpu.memory_space<vmem>>, vector<2x1024xf32>
    tpu.vector_store %arg4[%c0_5, %c0_6], %5 {strides = array<i32>} : memref<2x1024xf32, #tpu.memory_space<vmem>>, vector<2x1024xf32>,
    return
  }
  func.func @transform_0(%arg0: i32) -> (i32, i32) {
    %c0_i32 = arith.constant 0 : i32
    %c0_i32_0 = arith.constant 0 : i32
    %c0_i32_1 = arith.constant 0 : i32
    return %c0_i32, %c0_i32_0 : i32, i32
  }
  func.func @transform_1(%arg0: i32) -> (i32, i32) {
    %c0_i32 = arith.constant 0 : i32
    %c0_i32_0 = arith.constant 0 : i32
    %c0_i32_1 = arith.constant 0 : i32
    return %c0_i32, %c0_i32_0 : i32, i32
  }
  func.func @transform_2(%arg0: i32) -> (i32, i32) {
    %c0_i32 = arith.constant 0 : i32
    %c0_i32_0 = arith.constant 0 : i32
    %c0_i32_1 = arith.constant 0 : i32
    return %c0_i32, %c0_i32_0 : i32, i32
  }
  func.func @transform_3(%arg0: i32) -> (i32, i32) {
    %c0_i32 = arith.constant 0 : i32
    %c0_i32_0 = arith.constant 0 : i32
    %c0_i32_1 = arith.constant 0 : i32
    return %c0_i32, %c0_i32_0 : i32, i32
  }
}

</mosaic_0001>

<llo_original>
// kernel: tpu_custom_call.1
$region0: #{tpu_custom_call.1}
  #allocation0 [shape = 'u32[]', space=smem, size = 0x4, offset = 0x4, fixed_abs, tag = 'smem constant byte address 0x4 - core index']
  #allocation1 [shape = 'u32[72,128]{1,0:T(1,128)}', space=vmem, size = 0x9000, scoped, tag = 'internal scratch']
  %s0 = inlined_call_operand.hbm [shape: f32[2,100], index: 0, kind: input, shape index: {}]
  %s1 = inlined_call_operand.hbm [shape: f32[100,1024], index: 1, kind: input, shape index: {}]
  %s2 = inlined_call_operand.hbm [shape: f32[1,1024], index: 2, kind: input, shape index: {}]
  %s3 = inlined_call_operand.hbm [shape: f32[2,1024], index: 3, kind: output, shape index: {}]
  %s4 = sld [smem:[#allocation0]]
  $region34: #{tpu_custom_call.1} parent=0
    _
  %s6 = ssub.s32 1, %s4
  %s7 = scalar_select 0, %s6, %s4
  $region1: #{tpu_custom_call.1} parent=0
    #allocation2 [shape = 'u8[1024]{0}', space=vmem, size = 0x400, scoped, tag = 'input window, operand 0, single buffered']
    #allocation3 [shape = 's32[1]{0}', space=sflag, size = 0x4, scoped, tag = 'scoped memory for tpu_custom_call.1']
    #allocation4 [shape = 's32[1]{0}', space=sflag, size = 0x4, scoped, tag = 'scoped memory for tpu_custom_call.1']
    #allocation5 [shape = 'u8[425984]{0}', space=vmem, size = 0x68000, scoped, tag = 'input window, operand 1, single buffered']
    #allocation6 [shape = 's32[1]{0}', space=sflag, size = 0x4, scoped, tag = 'scoped memory for tpu_custom_call.1']
    #allocation7 [shape = 'u8[4096]{0}', space=vmem, size = 0x1000, scoped, tag = 'input window, operand 2, single buffered']
    #allocation8 [shape = 'u8[8192]{0}', space=vmem, size = 0x2000, scoped, tag = 'output window, operand 0, single buffered']
    %8 = vsyncpa [#allocation3], 0
    %9 = vsyncpa [#allocation6], 0
    %10 = vsyncpa [#allocation4], 0
    // Predicated region
    $region2: #{tpu_custom_call.1} parent=1 // pred_check
      _
    $region3: #{tpu_custom_call.1} parent=1 // pred_check_branch
      %12 = sbr.rel (0) target = $region5
    $region4: #{tpu_custom_call.1} parent=1 // pred_region
      %14 = vsyncadd [#allocation3], 0
      %s16 = sshll.u32 %s0, 4
      %s17 = int_to_ptr.hbm [resolvable:$true] %s16
      %s18 = sshll.u32 [#allocation2], 4
      %s19 = int_to_ptr.vmem [resolvable:$true] %s18
      %21 = dma.hbm_to_vmem [thread:$0]  %s17, 32, %s19, [#allocation3]
    $region5: #{tpu_custom_call.1} parent=1 // pred_fallthru
      _
    // Predicated region
    $region6: #{tpu_custom_call.1} parent=1 // pred_check
      _
    $region7: #{tpu_custom_call.1} parent=1 // pred_check_branch
      %23 = sbr.rel (0) target = $region9
    $region8: #{tpu_custom_call.1} parent=1 // pred_region
      %25 = vsyncadd [#allocation6], 0
      %s26 = sshll.u32 %s1, 4
      %s27 = int_to_ptr.hbm [resolvable:$true] %s26
      %s28 = sshll.u32 [#allocation5], 4
      %s29 = int_to_ptr.vmem [resolvable:$true] %s28
      %34 = dma.hbm_to_vmem [thread:$0]  %s27, 13312, %s29, [#allocation6], 1024, 1024, 64
    $region9: #{tpu_custom_call.1} parent=1 // pred_fallthru
      _
    // Predicated region
    $region10: #{tpu_custom_call.1} parent=1 // pred_check
      _
    $region11: #{tpu_custom_call.1} parent=1 // pred_check_branch
      %36 = sbr.rel (0) target = $region13
    $region12: #{tpu_custom_call.1} parent=1 // pred_region
      %38 = vsyncadd [#allocation6], 0
      %s40 = sshll.u32 %s2, 4
      %s41 = int_to_ptr.hbm [resolvable:$true] %s40
      %s42 = sshll.u32 [#allocation7], 4
      %s43 = int_to_ptr.vmem [resolvable:$true] %s42
      %45 = dma.hbm_to_vmem [thread:$0]  %s41, 128, %s43, [#allocation6]
    $region13: #{tpu_custom_call.1} parent=1 // pred_fallthru
      _
    // Predicated region
    $region14: #{tpu_custom_call.1} parent=1 // pred_check
      _
    $region15: #{tpu_custom_call.1} parent=1 // pred_check_branch
      %47 = sbr.rel (0) target = $region17
    $region16: #{tpu_custom_call.1} parent=1 // pred_region
      %49 = dma.done [#allocation3], 32
    $region17: #{tpu_custom_call.1} parent=1 // pred_fallthru
      _
    // Predicated region
    $region18: #{tpu_custom_call.1} parent=1 // pred_check
      _
    $region19: #{tpu_custom_call.1} parent=1 // pred_check_branch
      %51 = sbr.rel (0) target = $region21
    $region20: #{tpu_custom_call.1} parent=1 // pred_region
      %53 = dma.done [#allocation6], 13312
    $region21: #{tpu_custom_call.1} parent=1 // pred_fallthru
      _
    // Predicated region
    $region22: #{tpu_custom_call.1} parent=1 // pred_check
      _
    $region23: #{tpu_custom_call.1} parent=1 // pred_check_branch
      %55 = sbr.rel (0) target = $region25
    $region24: #{tpu_custom_call.1} parent=1 // pred_region
      %57 = dma.done [#allocation6], 128
    $region25: #{tpu_custom_call.1} parent=1 // pred_fallthru
      _
    %v58 = vld [vmem:[#allocation2] sm:$0x3]
    %v59 = vld [vmem:[#allocation5] sm:$0xff]
    %v60 = vld [vmem:[#allocation5 + $0x8] sm:$0xff]
    %v61 = vld [vmem:[#allocation5 + $0x10] sm:$0xff]
    %v62 = vld [vmem:[#allocation5 + $0x18] sm:$0xff]
    %v63 = vld [vmem:[#allocation5 + $0x20] sm:$0xff]
    %v64 = vld [vmem:[#allocation5 + $0x28] sm:$0xff]
    %v65 = vld [vmem:[#allocation5 + $0x30] sm:$0xff]
    %v66 = vld [vmem:[#allocation5 + $0x38] sm:$0xff]
    %v67 = vld [vmem:[#allocation5 + $0x40] sm:$0xff]
    %v68 = vld [vmem:[#allocation5 + $0x48] sm:$0xff]
    %v69 = vld [vmem:[#allocation5 + $0x50] sm:$0xff]
    %v70 = vld [vmem:[#allocation5 + $0x58] sm:$0xff]
    %v71 = vld [vmem:[#allocation5 + $0x60] sm:$0xff]
    %v72 = vld [vmem:[#allocation5 + $0x68] sm:$0xff]
    %v73 = vld [vmem:[#allocation5 + $0x70] sm:$0xff]
    %v74 = vld [vmem:[#allocation5 + $0x78] sm:$0xff]
    %v75 = vld [vmem:[#allocation5 + $0x80] sm:$0xff]
    %v76 = vld [vmem:[#allocation5 + $0x88] sm:$0xff]
    %v77 = vld [vmem:[#allocation5 + $0x90] sm:$0xff]
    %v78 = vld [vmem:[#allocation5 + $0x98] sm:$0xff]
    %v79 = vld [vmem:[#allocation5 + $0xa0] sm:$0xff]
    %v80 = vld [vmem:[#allocation5 + $0xa8] sm:$0xff]
    %v81 = vld [vmem:[#allocation5 + $0xb0] sm:$0xff]
    %v82 = vld [vmem:[#allocation5 + $0xb8] sm:$0xff]
    %v83 = vld [vmem:[#allocation5 + $0xc0] sm:$0xff]
    %v84 = vld [vmem:[#allocation5 + $0xc8] sm:$0xff]
    %v85 = vld [vmem:[#allocation5 + $0xd0] sm:$0xff]
    %v86 = vld [vmem:[#allocation5 + $0xd8] sm:$0xff]
    %v87 = vld [vmem:[#allocation5 + $0xe0] sm:$0xff]
    %v88 = vld [vmem:[#allocation5 + $0xe8] sm:$0xff]
    %v89 = vld [vmem:[#allocation5 + $0xf0] sm:$0xff]
    %v90 = vld [vmem:[#allocation5 + $0xf8] sm:$0xff]
    %v91 = vld [vmem:[#allocation5 + $0x100] sm:$0xff]
    %v92 = vld [vmem:[#allocation5 + $0x108] sm:$0xff]
    %v93 = vld [vmem:[#allocation5 + $0x110] sm:$0xff]
    %v94 = vld [vmem:[#allocation5 + $0x118] sm:$0xff]
    %v95 = vld [vmem:[#allocation5 + $0x120] sm:$0xff]
    %v96 = vld [vmem:[#allocation5 + $0x128] sm:$0xff]
    %v97 = vld [vmem:[#allocation5 + $0x130] sm:$0xff]
    %v98 = vld [vmem:[#allocation5 + $0x138] sm:$0xff]
    %v99 = vld [vmem:[#allocation5 + $0x140] sm:$0xff]
    %v100 = vld [vmem:[#allocation5 + $0x148] sm:$0xff]
    %v101 = vld [vmem:[#allocation5 + $0x150] sm:$0xff]
    %v102 = vld [vmem:[#allocation5 + $0x158] sm:$0xff]
    %v103 = vld [vmem:[#allocation5 + $0x160] sm:$0xff]
    %v104 = vld [vmem:[#allocation5 + $0x168] sm:$0xff]
    %v105 = vld [vmem:[#allocation5 + $0x170] sm:$0xff]
    %v106 = vld [vmem:[#allocation5 + $0x178] sm:$0xff]
    %v107 = vld [vmem:[#allocation5 + $0x180] sm:$0xff]
    %v108 = vld [vmem:[#allocation5 + $0x188] sm:$0xff]
    %v109 = vld [vmem:[#allocation5 + $0x190] sm:$0xff]
    %v110 = vld [vmem:[#allocation5 + $0x198] sm:$0xff]
    %v111 = vld [vmem:[#allocation5 + $0x1a0] sm:$0xff]
    %v112 = vld [vmem:[#allocation5 + $0x1a8] sm:$0xff]
    %v113 = vld [vmem:[#allocation5 + $0x1b0] sm:$0xff]
    %v114 = vld [vmem:[#allocation5 + $0x1b8] sm:$0xff]
    %v115 = vld [vmem:[#allocation5 + $0x1c0] sm:$0xff]
    %v116 = vld [vmem:[#allocation5 + $0x1c8] sm:$0xff]
    %v117 = vld [vmem:[#allocation5 + $0x1d0] sm:$0xff]
    %v118 = vld [vmem:[#allocation5 + $0x1d8] sm:$0xff]
    %v119 = vld [vmem:[#allocation5 + $0x1e0] sm:$0xff]
    %v120 = vld [vmem:[#allocation5 + $0x1e8] sm:$0xff]
    %v121 = vld [vmem:[#allocation5 + $0x1f0] sm:$0xff]
    %v122 = vld [vmem:[#allocation5 + $0x1f8] sm:$0xff]
    %v123 = vld [vmem:[#allocation5 + $0x200] sm:$0xff]
    %v124 = vld [vmem:[#allocation5 + $0x208] sm:$0xff]
    %v125 = vld [vmem:[#allocation5 + $0x210] sm:$0xff]
    %v126 = vld [vmem:[#allocation5 + $0x218] sm:$0xff]
    %v127 = vld [vmem:[#allocation5 + $0x220] sm:$0xff]
    %v128 = vld [vmem:[#allocation5 + $0x228] sm:$0xff]
    %v129 = vld [vmem:[#allocation5 + $0x230] sm:$0xff]
    %v130 = vld [vmem:[#allocation5 + $0x238] sm:$0xff]
    %v131 = vld [vmem:[#allocation5 + $0x240] sm:$0xff]
    %v132 = vld [vmem:[#allocation5 + $0x248] sm:$0xff]
    %v133 = vld [vmem:[#allocation5 + $0x250] sm:$0xff]
    %v134 = vld [vmem:[#allocation5 + $0x258] sm:$0xff]
    %v135 = vld [vmem:[#allocation5 + $0x260] sm:$0xff]
    %v136 = vld [vmem:[#allocation5 + $0x268] sm:$0xff]
    %v137 = vld [vmem:[#allocation5 + $0x270] sm:$0xff]
    %v138 = vld [vmem:[#allocation5 + $0x278] sm:$0xff]
    %v139 = vld [vmem:[#allocation5 + $0x280] sm:$0xff]
    %v140 = vld [vmem:[#allocation5 + $0x288] sm:$0xff]
    %v141 = vld [vmem:[#allocation5 + $0x290] sm:$0xff]
    %v142 = vld [vmem:[#allocation5 + $0x298] sm:$0xff]
    %v143 = vld [vmem:[#allocation5 + $0x2a0] sm:$0xff]
    %v144 = vld [vmem:[#allocation5 + $0x2a8] sm:$0xff]
    %v145 = vld [vmem:[#allocation5 + $0x2b0] sm:$0xff]
    %v146 = vld [vmem:[#allocation5 + $0x2b8] sm:$0xff]
    %v147 = vld [vmem:[#allocation5 + $0x2c0] sm:$0xff]
    %v148 = vld [vmem:[#allocation5 + $0x2c8] sm:$0xff]
    %v149 = vld [vmem:[#allocation5 + $0x2d0] sm:$0xff]
    %v150 = vld [vmem:[#allocation5 + $0x2d8] sm:$0xff]
    %v151 = vld [vmem:[#allocation5 + $0x2e0] sm:$0xff]
    %v152 = vld [vmem:[#allocation5 + $0x2e8] sm:$0xff]
    %v153 = vld [vmem:[#allocation5 + $0x2f0] sm:$0xff]
    %v154 = vld [vmem:[#allocation5 + $0x2f8] sm:$0xff]
    %v155 = vld [vmem:[#allocation5 + $0x300] sm:$0xf]
    %v156 = vld [vmem:[#allocation5 + $0x308] sm:$0xf]
    %v157 = vld [vmem:[#allocation5 + $0x310] sm:$0xf]
    %v158 = vld [vmem:[#allocation5 + $0x318] sm:$0xf]
    %v159 = vld [vmem:[#allocation5 + $0x320] sm:$0xf]
    %v160 = vld [vmem:[#allocation5 + $0x328] sm:$0xf]
    %v161 = vld [vmem:[#allocation5 + $0x330] sm:$0xf]
    %v162 = vld [vmem:[#allocation5 + $0x338] sm:$0xf]
    %v163 = vld [vmem:[#allocation7] sm:$0xff]
    %v165 = vperm.slane %v163, 0
    %v166 = vperm.slane %v163, 1
    %v167 = vperm.slane %v163, 2
    %v168 = vperm.slane %v163, 3
    %v169 = vperm.slane %v163, 4
    %v170 = vperm.slane %v163, 5
    %v171 = vperm.slane %v163, 6
    %v172 = vperm.slane %v163, 7
    %vm181 = vcmask 818176
    %v183 = vsel %vm181, %v58, 0
    %vm185 = vcmask 1043456
    %v187 = vsel %vm185, %v155, 0
    %v190 = vsel %vm185, %v156, 0
    %v193 = vsel %vm185, %v157, 0
    %v196 = vsel %vm185, %v158, 0
    %v199 = vsel %vm185, %v159, 0
    %v202 = vsel %vm185, %v160, 0
    %v205 = vsel %vm185, %v161, 0
    %v208 = vsel %vm185, %v162, 0
    %210 = vmatpush.msra.mxu0 0.0
    %211 = vmatpush.msra.mxu0 0.0
    %212 = vmatpush.msra.mxu0 0.0
    %213 = vmatpush.msra.mxu0 %v187
    %214 = vmatpush.msra.mxu0 %v147
    %215 = vmatpush.msra.mxu0 %v139
    %216 = vmatpush.msra.mxu0 %v131
    %217 = vmatpush.msra.mxu0 %v123
    %218 = vmatpush.msra.mxu0 %v115
    %219 = vmatpush.msra.mxu0 %v107
    %220 = vmatpush.msra.mxu0 %v99
    %221 = vmatpush.msra.mxu0 %v91
    %222 = vmatpush.msra.mxu0 %v83
    %223 = vmatpush.msra.mxu0 %v75
    %224 = vmatpush.msra.mxu0 %v67
    %225 = vmatpush.msra.mxu0 %v59
    %226 = vmatmul.f32.gmra.mxu0 %v183
    %v227 = vpop.f32.mrf.mxu0
    %v228 = vadd.f32 %v165, %v227
    %229 = vdwg.mxu0
    %230 = vmatpush.msra.mxu0 0.0
    %231 = vmatpush.msra.mxu0 0.0
    %232 = vmatpush.msra.mxu0 0.0
    %233 = vmatpush.msra.mxu0 %v190
    %234 = vmatpush.msra.mxu0 %v148
    %235 = vmatpush.msra.mxu0 %v140
    %236 = vmatpush.msra.mxu0 %v132
    %237 = vmatpush.msra.mxu0 %v124
    %238 = vmatpush.msra.mxu0 %v116
    %239 = vmatpush.msra.mxu0 %v108
    %240 = vmatpush.msra.mxu0 %v100
    %241 = vmatpush.msra.mxu0 %v92
    %242 = vmatpush.msra.mxu0 %v84
    %243 = vmatpush.msra.mxu0 %v76
    %244 = vmatpush.msra.mxu0 %v68
    %245 = vmatpush.msra.mxu0 %v60
    %246 = vmatmul.f32.gmra.mxu0 %v183
    %v247 = vpop.f32.mrf.mxu0
    %v248 = vadd.f32 %v166, %v247
    %249 = vdwg.mxu0
    %250 = vmatpush.msra.mxu0 0.0
    %251 = vmatpush.msra.mxu0 0.0
    %252 = vmatpush.msra.mxu0 0.0
    %253 = vmatpush.msra.mxu0 %v193
    %254 = vmatpush.msra.mxu0 %v149
    %255 = vmatpush.msra.mxu0 %v141
    %256 = vmatpush.msra.mxu0 %v133
    %257 = vmatpush.msra.mxu0 %v125
    %258 = vmatpush.msra.mxu0 %v117
    %259 = vmatpush.msra.mxu0 %v109
    %260 = vmatpush.msra.mxu0 %v101
    %261 = vmatpush.msra.mxu0 %v93
    %262 = vmatpush.msra.mxu0 %v85
    %263 = vmatpush.msra.mxu0 %v77
    %264 = vmatpush.msra.mxu0 %v69
    %265 = vmatpush.msra.mxu0 %v61
    %266 = vmatmul.f32.gmra.mxu0 %v183
    %v267 = vpop.f32.mrf.mxu0
    %v268 = vadd.f32 %v167, %v267
    %269 = vdwg.mxu0
    %270 = vmatpush.msra.mxu0 0.0
    %271 = vmatpush.msra.mxu0 0.0
    %272 = vmatpush.msra.mxu0 0.0
    %273 = vmatpush.msra.mxu0 %v196
    %274 = vmatpush.msra.mxu0 %v150
    %275 = vmatpush.msra.mxu0 %v142
    %276 = vmatpush.msra.mxu0 %v134
    %277 = vmatpush.msra.mxu0 %v126
    %278 = vmatpush.msra.mxu0 %v118
    %279 = vmatpush.msra.mxu0 %v110
    %280 = vmatpush.msra.mxu0 %v102
    %281 = vmatpush.msra.mxu0 %v94
    %282 = vmatpush.msra.mxu0 %v86
    %283 = vmatpush.msra.mxu0 %v78
    %284 = vmatpush.msra.mxu0 %v70
    %285 = vmatpush.msra.mxu0 %v62
    %286 = vmatmul.f32.gmra.mxu0 %v183
    %v287 = vpop.f32.mrf.mxu0
    %v288 = vadd.f32 %v168, %v287
    %289 = vdwg.mxu0
    %290 = vmatpush.msra.mxu0 0.0
    %291 = vmatpush.msra.mxu0 0.0
    %292 = vmatpush.msra.mxu0 0.0
    %293 = vmatpush.msra.mxu0 %v199
    %294 = vmatpush.msra.mxu0 %v151
    %295 = vmatpush.msra.mxu0 %v143
    %296 = vmatpush.msra.mxu0 %v135
    %297 = vmatpush.msra.mxu0 %v127
    %298 = vmatpush.msra.mxu0 %v119
    %299 = vmatpush.msra.mxu0 %v111
    %300 = vmatpush.msra.mxu0 %v103
    %301 = vmatpush.msra.mxu0 %v95
    %302 = vmatpush.msra.mxu0 %v87
    %303 = vmatpush.msra.mxu0 %v79
    %304 = vmatpush.msra.mxu0 %v71
    %305 = vmatpush.msra.mxu0 %v63
    %306 = vmatmul.f32.gmra.mxu0 %v183
    %v307 = vpop.f32.mrf.mxu0
    %v308 = vadd.f32 %v169, %v307
    %309 = vdwg.mxu0
    %310 = vmatpush.msra.mxu0 0.0
    %311 = vmatpush.msra.mxu0 0.0
    %312 = vmatpush.msra.mxu0 0.0
    %313 = vmatpush.msra.mxu0 %v202
    %314 = vmatpush.msra.mxu0 %v152
    %315 = vmatpush.msra.mxu0 %v144
    %316 = vmatpush.msra.mxu0 %v136
    %317 = vmatpush.msra.mxu0 %v128
    %318 = vmatpush.msra.mxu0 %v120
    %319 = vmatpush.msra.mxu0 %v112
    %320 = vmatpush.msra.mxu0 %v104
    %321 = vmatpush.msra.mxu0 %v96
    %322 = vmatpush.msra.mxu0 %v88
    %323 = vmatpush.msra.mxu0 %v80
    %324 = vmatpush.msra.mxu0 %v72
    %325 = vmatpush.msra.mxu0 %v64
    %326 = vmatmul.f32.gmra.mxu0 %v183
    %v327 = vpop.f32.mrf.mxu0
    %v328 = vadd.f32 %v170, %v327
    %329 = vdwg.mxu0
    %330 = vmatpush.msra.mxu0 0.0
    %331 = vmatpush.msra.mxu0 0.0
    %332 = vmatpush.msra.mxu0 0.0
    %333 = vmatpush.msra.mxu0 %v205
    %334 = vmatpush.msra.mxu0 %v153
    %335 = vmatpush.msra.mxu0 %v145
    %336 = vmatpush.msra.mxu0 %v137
    %337 = vmatpush.msra.mxu0 %v129
    %338 = vmatpush.msra.mxu0 %v121
    %339 = vmatpush.msra.mxu0 %v113
    %340 = vmatpush.msra.mxu0 %v105
    %341 = vmatpush.msra.mxu0 %v97
    %342 = vmatpush.msra.mxu0 %v89
    %343 = vmatpush.msra.mxu0 %v81
    %344 = vmatpush.msra.mxu0 %v73
    %345 = vmatpush.msra.mxu0 %v65
    %346 = vmatmul.f32.gmra.mxu0 %v183
    %v347 = vpop.f32.mrf.mxu0
    %v348 = vadd.f32 %v171, %v347
    %349 = vdwg.mxu0
    %350 = vmatpush.msra.mxu0 0.0
    %351 = vmatpush.msra.mxu0 0.0
    %352 = vmatpush.msra.mxu0 0.0
    %353 = vmatpush.msra.mxu0 %v208
    %354 = vmatpush.msra.mxu0 %v154
    %355 = vmatpush.msra.mxu0 %v146
    %356 = vmatpush.msra.mxu0 %v138
    %357 = vmatpush.msra.mxu0 %v130
    %358 = vmatpush.msra.mxu0 %v122
    %359 = vmatpush.msra.mxu0 %v114
    %360 = vmatpush.msra.mxu0 %v106
    %361 = vmatpush.msra.mxu0 %v98
    %362 = vmatpush.msra.mxu0 %v90
    %363 = vmatpush.msra.mxu0 %v82
    %364 = vmatpush.msra.mxu0 %v74
    %365 = vmatpush.msra.mxu0 %v66
    %366 = vmatmul.f32.gmra.mxu0 %v183
    %v367 = vpop.f32.mrf.mxu0
    %v368 = vadd.f32 %v172, %v367
    %369 = vdwg.mxu0
    %v378 = vrot.slane %v248, 6
    %v379 = vrot.slane %v268, 4
    %v380 = vrot.slane %v288, 2
    %v381 = vrot.slane %v328, 6
    %v382 = vrot.slane %v348, 4
    %v383 = vrot.slane %v368, 2
    %vm384 = vcmask 1041408
    %v385 = vsel %vm384, %v228, %v378
    %vm386 = vcmask 1045508
    %v387 = vsel %vm386, %v379, %v380
    %v388 = vsel %vm185, %v385, %v387
    %v389 = vsel %vm384, %v308, %v381
    %v390 = vsel %vm386, %v382, %v383
    %v391 = vsel %vm185, %v389, %v390
    %394 = vst [vmem:[#allocation8] sm:$0xff] %v388
    %395 = vst [vmem:[#allocation8 + $0x8] sm:$0xff] %v391
    // Predicated region
    $region26: #{tpu_custom_call.1} parent=1 // pred_check
      _
    $region27: #{tpu_custom_call.1} parent=1 // pred_check_branch
      %397 = sbr.rel (0) target = $region29
    $region28: #{tpu_custom_call.1} parent=1 // pred_region
      %399 = vsyncadd [#allocation4], 0
      %s401 = sshll.u32 [#allocation8], 4
      %s402 = int_to_ptr.vmem [resolvable:$true] %s401
      %s403 = sshll.u32 %s3, 4
      %s404 = int_to_ptr.hbm [resolvable:$true] %s403
      %406 = dma.vmem_to_hbm [thread:$0]  %s402, 256, %s404, [#allocation4]
    $region29: #{tpu_custom_call.1} parent=1 // pred_fallthru
      _
    // Predicated region
    $region30: #{tpu_custom_call.1} parent=1 // pred_check
      _
    $region31: #{tpu_custom_call.1} parent=1 // pred_check_branch
      %408 = sbr.rel (0) target = $region33
    $region32: #{tpu_custom_call.1} parent=1 // pred_region
      %410 = dma.done [#allocation4], 256
    $region33: #{tpu_custom_call.1} parent=1 // pred_fallthru
      _
    %411 = vsyncpa [#allocation3], 1
    %412 = vsyncpa [#allocation6], 1
    %413 = vsyncpa [#allocation4], 1

</llo_original>
